<compile_context>
chip_gen: v7x
topology: tpu7x:2x2x1
jax: 0.10.0
libtpu: 0.0.40
codegen_flags: <defaults>
</compile_context>

<pallas_src>
import functools

import jax
import jax.numpy as jnp
from jax.experimental import pallas as pl
from jax.experimental.pallas import tpu as pltpu


def _round_up(x, m):
    return (x + m - 1) // m * m


def _vmem_limit(block_bytes):
    # Per-call VMEM request: double-buffered blocks + headroom, capped well
    # below the 64 MiB physical VMEM of a v7x TensorCore.
    return int(min(48 * 1024 * 1024, max(8 * 1024 * 1024, 3 * block_bytes)))


# --------------------------- tiled GEMM + bias --------------------------------

def _gemm_kernel_single(a_ref, b_ref, bias_ref, o_ref):
    acc = jnp.dot(a_ref[...], b_ref[...], preferred_element_type=jnp.float32)
    acc = acc + bias_ref[...].astype(jnp.float32)
    o_ref[...] = acc.astype(o_ref.dtype)


def _gemm_kernel_multi(a_ref, b_ref, bias_ref, o_ref, acc_ref):
    @pl.when(pl.program_id(2) == 0)
    def _():
        acc_ref[...] = jnp.zeros_like(acc_ref)

    acc_ref[...] += jnp.dot(a_ref[...], b_ref[...],
                            preferred_element_type=jnp.float32)

    @pl.when(pl.program_id(2) == pl.num_programs(2) - 1)
    def _():
        o_ref[...] = (acc_ref[...] + bias_ref[...].astype(jnp.float32)
                      ).astype(o_ref.dtype)


def matmul_bias(a, b, bias, *, out_dtype=jnp.float32):
    """out = a @ b + bias (bias over columns).  bf16 MXU operands, f32
    accumulation.  K stays full-extent (no pad to 128) when it fits a single
    block; the K grid axis / scratch accumulator only appear for large K."""
    M, K = a.shape
    K2, N = b.shape
    assert K == K2
    a = a.astype(jnp.bfloat16)
    b = b.astype(jnp.bfloat16)

    # K: pad only to a sublane multiple; single block when small.
    K8 = _round_up(K, 8)
    if K8 != K:
        a = jnp.pad(a, ((0, 0), (0, K8 - K)))
        b = jnp.pad(b, ((0, K8 - K), (0, 0)))
    single_k = K8 <= 1024
    tk = K8 if single_k else 512
    Kp = K8 if single_k else _round_up(K8, tk)
    if Kp != K8:
        a = jnp.pad(a, ((0, 0), (0, Kp - K8)))
        b = jnp.pad(b, ((0, Kp - K8), (0, 0)))

    # N: full-extent when below one lane tile (e.g. the 12-label linear);
    # otherwise lane-aligned tiles.
    if N < 128:
        tn, Np = N, N
    else:
        Np = _round_up(N, 128)
        tn = 512 if Np % 512 == 0 else (256 if Np % 256 == 0 else 128)
        if Np != N:
            b = jnp.pad(b, ((0, 0), (0, Np - N)))

    tm = min(256, _round_up(M, 8))
    Mp = _round_up(M, tm)
    if Mp != M:
        a = jnp.pad(a, ((0, Mp - M), (0, 0)))

    bias2d = bias.reshape(1, N).astype(jnp.float32)
    if Np != N:
        bias2d = jnp.pad(bias2d, ((0, 0), (0, Np - N)))

    cost = pl.CostEstimate(flops=2 * Mp * Np * Kp, transcendentals=0,
                           bytes_accessed=2 * (Mp * Kp + Kp * Np) + 4 * Mp * Np)

    if single_k:
        block_bytes = 2 * (tm * tk + tk * tn) + 4 * (tn + tm * tn)
        out = pl.pallas_call(
            _gemm_kernel_single,
            out_shape=jax.ShapeDtypeStruct((Mp, Np), out_dtype),
            grid=(Mp // tm, Np // tn),
            in_specs=[pl.BlockSpec((tm, tk), lambda i, j: (i, 0)),
                      pl.BlockSpec((tk, tn), lambda i, j: (0, j)),
                      pl.BlockSpec((1, tn), lambda i, j: (0, j))],
            out_specs=pl.BlockSpec((tm, tn), lambda i, j: (i, j)),
            compiler_params=pltpu.CompilerParams(
                dimension_semantics=("parallel", "parallel"),
                vmem_limit_bytes=_vmem_limit(block_bytes)),
            cost_estimate=cost,
        )(a, b, bias2d)
    else:
        block_bytes = 2 * (tm * tk + tk * tn) + 4 * (tn + 2 * tm * tn)
        out = pl.pallas_call(
            _gemm_kernel_multi,
            out_shape=jax.ShapeDtypeStruct((Mp, Np), out_dtype),
            grid=(Mp // tm, Np // tn, Kp // tk),
            in_specs=[pl.BlockSpec((tm, tk), lambda i, j, k: (i, k)),
                      pl.BlockSpec((tk, tn), lambda i, j, k: (k, j)),
                      pl.BlockSpec((1, tn), lambda i, j, k: (0, j))],
            out_specs=pl.BlockSpec((tm, tn), lambda i, j, k: (i, j)),
            scratch_shapes=[pltpu.VMEM((tm, tn), jnp.float32)],
            compiler_params=pltpu.CompilerParams(
                dimension_semantics=("parallel", "parallel", "arbitrary"),
                vmem_limit_bytes=_vmem_limit(block_bytes)),
            cost_estimate=cost,
        )(a, b, bias2d)

    if (Mp, Np) != (M, N):
        out = out[:M, :N]
    return out


# ----------------- fused conv-GEMM + bias + LeakyReLU + 2x2 pool --------------

def _conv_pool_kernel(w_ref, p_ref, b_ref, o_ref, acc_ref, *, slope):
    q = pl.program_id(1)
    z = jnp.dot(w_ref[...], p_ref[0], preferred_element_type=jnp.float32)

    @pl.when(q == 0)
    def _():
        acc_ref[...] = z

    @pl.when(q > 0)
    def _():
        acc_ref[...] = jnp.maximum(acc_ref[...], z)

    @pl.when(q == pl.num_programs(1) - 1)
    def _():
        # bias + LeakyReLU commute with max, so apply them once on the pooled
        # accumulator.
        a = acc_ref[...] + b_ref[...].astype(jnp.float32)
        a = jnp.where(a >= 0.0, a, jnp.float32(slope) * a)
        o_ref[...] = a.astype(o_ref.dtype)


def conv_pool_gemm(wmat, p, bias, *, slope):
    """Fused Conv-as-GEMM + bias + LeakyReLU + 2x2 max-pool.
    wmat: (Cout, K) with K = Cin*3*3.  p: (4, K, L) patch matrices, one per
    2x2 pool-window offset, columns ordered (n, h_pooled, w_pooled).  The q
    axis is reduced with max into a VMEM accumulator so the un-pooled
    activation never touches HBM.  Returns (Cout, L) in bfloat16."""
    cout, k = wmat.shape
    q, k2, l = p.shape
    assert q == 4 and k2 == k
    k8 = _round_up(k, 8)
    if k8 != k:
        wmat = jnp.pad(wmat, ((0, 0), (0, k8 - k)))
        p = jnp.pad(p, ((0, 0), (0, k8 - k), (0, 0)))
    lp = _round_up(l, 128)
    if lp != l:
        p = jnp.pad(p, ((0, 0), (0, 0), (0, lp - l)))
    tl = 512 if lp % 512 == 0 else (256 if lp % 256 == 0 else 128)

    wmat = wmat.astype(jnp.bfloat16)
    p = p.astype(jnp.bfloat16)
    bias2d = bias.reshape(cout, 1).astype(jnp.float32)

    block_bytes = 2 * (cout * k8 + k8 * tl + cout * tl) + 4 * (cout + cout * tl)
    cost = pl.CostEstimate(
        flops=2 * cout * k8 * lp * 4, transcendentals=0,
        bytes_accessed=2 * (4 * k8 * lp + cout * k8 + cout * lp))

    out = pl.pallas_call(
        functools.partial(_conv_pool_kernel, slope=slope),
        out_shape=jax.ShapeDtypeStruct((cout, lp), jnp.bfloat16),
        grid=(lp // tl, 4),
        in_specs=[pl.BlockSpec((cout, k8), lambda j, q_: (0, 0)),
                  pl.BlockSpec((1, k8, tl), lambda j, q_: (q_, 0, j)),
                  pl.BlockSpec((cout, 1), lambda j, q_: (0, 0))],
        out_specs=pl.BlockSpec((cout, tl), lambda j, q_: (0, j)),
        scratch_shapes=[pltpu.VMEM((cout, tl), jnp.float32)],
        compiler_params=pltpu.CompilerParams(
            dimension_semantics=("parallel", "arbitrary"),
            vmem_limit_bytes=_vmem_limit(block_bytes)),
        cost_estimate=cost,
    )(wmat, p, bias2d)
    if lp != l:
        out = out[:, :l]
    return out


def conv_block(x_cnhw, weight, bias, leaky_slope):
    """ConvBlock (eval): Conv2d(3x3, 'same', stride 1) -> LeakyReLU -> MaxPool2x2,
    fused into a single Pallas GEMM.  Activations stay (C, N, H, W) bf16."""
    c, n, h, w = x_cnhw.shape
    cout, cin, kh, kw = weight.shape
    assert (cin, kh, kw) == (c, 3, 3)
    hp, wp = h // 2, w // 2
    xp = jnp.pad(x_cnhw.astype(jnp.bfloat16), ((0, 0), (0, 0), (1, 1), (1, 1)))
    # TODO(synk): the patch matrices below are still materialized by XLA
    # (strided slices + stack, ~9x activation volume); fusing this gather into
    # the GEMM's index_map would remove the remaining im2col HBM traffic.
    qs = []
    for dh in (0, 1):
        for dw in (0, 1):
            taps = [xp[:, :, dh + dy: dh + dy + 2 * hp: 2,
                        dw + dx: dw + dx + 2 * wp: 2]
                    for dy in range(3) for dx in range(3)]
            qs.append(jnp.stack(taps, axis=1).reshape(c * 9, n * hp * wp))
    p = jnp.stack(qs, axis=0)                                  # (4, C*9, L)
    wmat = weight.reshape(cout, c * 9)
    out = conv_pool_gemm(wmat, p, bias, slope=leaky_slope)     # (Cout, L) bf16
    return out.reshape(cout, n, hp, wp)


# --------------------------- fused bidirectional LSTM ------------------------

def _bilstm_kernel(gxf_ref, gxb_ref, wr_ref, of_ref, ob_ref,
                   h_ref, cf_ref, cb_ref, *, tb, hidden):
    """One time-block per grid step; fwd and bwd directions fused.  Gates are
    pre-reordered to [i, f, o, g] per direction; both directions' recurrent
    matmuls are one (N,2H)x(2H,8H) dot against a block-diagonal weight."""
    H = hidden

    @pl.when(pl.program_id(0) == 0)
    def _():
        h_ref[...] = jnp.zeros_like(h_ref)
        cf_ref[...] = jnp.zeros_like(cf_ref)
        cb_ref[...] = jnp.zeros_like(cb_ref)

    wr = wr_ref[...]
    h = h_ref[...]
    cf = cf_ref[...]
    cb = cb_ref[...]
    for tt in range(tb):                      # unrolled inner time loop
        r = jnp.dot(h.astype(jnp.bfloat16), wr,
                    preferred_element_type=jnp.float32)        # (N, 8H)
        gf = gxf_ref[tt] + r[:, :4 * H]
        gb = gxb_ref[tb - 1 - tt] + r[:, 4 * H:]
        sf = jax.nn.sigmoid(gf[:, :3 * H])        # [i, f, o] fwd, contiguous
        gfc = jnp.tanh(gf[:, 3 * H:])
        sb = jax.nn.sigmoid(gb[:, :3 * H])        # [i, f, o] bwd, contiguous
        gbc = jnp.tanh(gb[:, 3 * H:])
        cf = sf[:, H:2 * H] * cf + sf[:, 0:H] * gfc
        cb = sb[:, H:2 * H] * cb + sb[:, 0:H] * gbc
        hf = sf[:, 2 * H:3 * H] * jnp.tanh(cf)
        hb = sb[:, 2 * H:3 * H] * jnp.tanh(cb)
        of_ref[tt] = hf.astype(of_ref.dtype)
        ob_ref[tb - 1 - tt] = hb.astype(ob_ref.dtype)
        h = jnp.concatenate([hf, hb], axis=-1)
    h_ref[...] = h
    cf_ref[...] = cf
    cb_ref[...] = cb


def _reorder_ifog_rows(w, hidden):
    """Rows of a (4H, ...) torch LSTM weight/bias from [i, f, g, o] to [i, f, o, g]."""
    H = hidden
    return jnp.concatenate(
        [w[0:H], w[H:2 * H], w[3 * H:4 * H], w[2 * H:3 * H]], axis=0)


def bilstm_layer(x, layer_params, hidden):
    """Bidirectional LSTM layer; x: (T, N, D) with N a multiple of 8.
    Returns (T, N, 2*hidden) float32."""
    T, N, D = x.shape
    H = hidden
    wih_f, whh_f, bih_f, bhh_f = layer_params["fwd"]
    wih_b, whh_b, bih_b, bhh_b = layer_params["bwd"]

    # Fused fwd+bwd input projection: one GEMM with 8H output lanes; gate
    # order per direction is [i, f, o, g].
    w_in = jnp.concatenate([_reorder_ifog_rows(wih_f, H).T,
                            _reorder_ifog_rows(wih_b, H).T], axis=1)   # (D, 8H)
    b_in = jnp.concatenate([_reorder_ifog_rows(bih_f + bhh_f, H),
                            _reorder_ifog_rows(bih_b + bhh_b, H)])
    gx = matmul_bias(x.reshape(T * N, D), w_in, b_in).reshape(T, N, 8 * H)

    # Block-diagonal recurrent weight: rows [hf | hb], cols [fwd | bwd gates].
    wr = jnp.zeros((2 * H, 8 * H), jnp.float32)
    wr = wr.at[0:H, 0:4 * H].set(_reorder_ifog_rows(whh_f, H).T)
    wr = wr.at[H:2 * H, 4 * H:8 * H].set(_reorder_ifog_rows(whh_b, H).T)
    wr = wr.astype(jnp.bfloat16)

    # Pad T to a multiple of a fixed time-block.  Zero-padded gate
    # pre-activations keep the zero state exactly zero, so the backward
    # direction (which visits the padding first) is unaffected.
    tb = min(16, _round_up(T, 4))
    Tp = _round_up(T, tb)
    if Tp != T:
        gx = jnp.pad(gx, ((0, Tp - T), (0, 0), (0, 0)))
    nb = Tp // tb

    kernel = functools.partial(_bilstm_kernel, tb=tb, hidden=H)
    block_bytes = (4 * (2 * tb * N * 4 * H) + 2 * (2 * H * 8 * H)
                   + 4 * (2 * tb * N * H) + 4 * (N * 2 * H + 2 * N * H))
    hf, hb = pl.pallas_call(
        kernel,
        out_shape=(jax.ShapeDtypeStruct((Tp, N, H), jnp.float32),
                   jax.ShapeDtypeStruct((Tp, N, H), jnp.float32)),
        grid=(nb,),
        in_specs=[pl.BlockSpec((tb, N, 4 * H), lambda s: (s, 0, 0)),
                  pl.BlockSpec((tb, N, 4 * H), lambda s: (nb - 1 - s, 0, 1)),
                  pl.BlockSpec((2 * H, 8 * H), lambda s: (0, 0))],
        out_specs=[pl.BlockSpec((tb, N, H), lambda s: (s, 0, 0)),
                   pl.BlockSpec((tb, N, H), lambda s: (nb - 1 - s, 0, 0))],
        scratch_shapes=[pltpu.VMEM((N, 2 * H), jnp.float32),
                        pltpu.VMEM((N, H), jnp.float32),
                        pltpu.VMEM((N, H), jnp.float32)],
        compiler_params=pltpu.CompilerParams(
            dimension_semantics=("arbitrary",),
            vmem_limit_bytes=_vmem_limit(block_bytes)),
    )(gx, gx, wr)
    out = jnp.concatenate([hf, hb], axis=-1)
    return out[:T]


# ------------------------------- model glue ----------------------------------

def image_pooling_sequencer_none(x_cnhw, fix_size):
    """ImagePoolingSequencer('none-<fix_size>'), columnwise: -> (W, N, C*H)."""
    c, n, h, w = x_cnhw.shape
    assert h == fix_size, "sequencer 'none-%d' expects height %d" % (fix_size, fix_size)
    return x_cnhw.transpose(3, 1, 0, 2).reshape(w, n, c * h)


def laia_crnn_forward(x_nchw, params, cfg):
    # conv stack (internal (C, N, H, W) layout avoids per-block transposes)
    x = jnp.transpose(x_nchw, (1, 0, 2, 3))
    for blk in params["conv_blocks"]:
        x = conv_block(x, blk["weight"], blk["bias"], cfg["leaky_slope"])
    x = image_pooling_sequencer_none(x, cfg["fix_size"])       # (T=W, N, C*H)
    # TODO(synk): rnn_dropout / lin_dropout are identity in eval mode.
    T, N, _ = x.shape
    n_pad = _round_up(N, 8)                                    # sublane-align batch
    if n_pad != N:
        x = jnp.pad(x, ((0, 0), (0, n_pad - N), (0, 0)))
    for layer_params in params["rnn_layers"]:
        x = bilstm_layer(x, layer_params, cfg["rnn_units"])
    # TODO(synk): the tiny (2H -> num_labels) linear could be folded into the
    # last bilstm epilogue to avoid this extra pallas_call + concat pass.
    y = matmul_bias(x.reshape(T * n_pad, 2 * cfg["rnn_units"]),
                    params["lin_w"].T, params["lin_b"])
    return y.reshape(T, n_pad, -1)[:, :N, :]


# --------------------------- deterministic params ----------------------------

def _uinit(key, shape, scale):
    return jax.random.uniform(key, shape, jnp.float32, -scale, scale)


def make_params(key, cfg):
    keys = iter(jax.random.split(key, 64))
    params = {"conv_blocks": [], "rnn_layers": []}
    ni = cfg["num_input_channels"]
    for nh in cfg["cnn_num_features"]:
        fan_in = ni * 3 * 3
        params["conv_blocks"].append({
            "weight": _uinit(next(keys), (nh, ni, 3, 3), (1.0 / fan_in) ** 0.5),
            "bias": _uinit(next(keys), (nh,), (1.0 / fan_in) ** 0.5),
        })
        ni = nh
    rnn_in = ni * cfg["fix_size"]
    H = cfg["rnn_units"]
    for layer in range(cfg["rnn_layers"]):
        d_in = rnn_in if layer == 0 else 2 * H
        layer_p = {}
        for direction in ("fwd", "bwd"):
            s = (1.0 / H) ** 0.5
            layer_p[direction] = (
                _uinit(next(keys), (4 * H, d_in), s),   # weight_ih
                _uinit(next(keys), (4 * H, H), s),      # weight_hh
                _uinit(next(keys), (4 * H,), s),        # bias_ih
                _uinit(next(keys), (4 * H,), s),        # bias_hh
            )
        params["rnn_layers"].append(layer_p)
    s = (1.0 / (2 * H)) ** 0.5
    params["lin_w"] = _uinit(next(keys), (cfg["num_output_labels"], 2 * H), s)
    params["lin_b"] = _uinit(next(keys), (cfg["num_output_labels"],), s)
    return params


# ----------------------------------- main -------------------------------------

if __name__ == "__main__":
    # Small LaiaCRNN config:
    #   num_input_channels=1, cnn_num_features=[8, 16], kernel=3, stride=1,
    #   dilation=1, activation=LeakyReLU(0.01), poolsize=2, dropout=0, bn=False,
    #   image_sequencer='none-4', rnn_units=32, rnn_layers=2 (bidir LSTM),
    #   num_output_labels=12.
    cfg = dict(
        num_input_channels=1,
        num_output_labels=12,
        cnn_num_features=[8, 16],
        fix_size=4,             # 16 / 2 / 2 = 4 -> sequencer 'none-4'
        rnn_units=32,
        rnn_layers=2,
        leaky_slope=0.01,
    )

    key = jax.random.PRNGKey(0)
    kx, kp = jax.random.split(key)
    x = jax.random.normal(kx, (2, 1, 16, 32), dtype=jnp.float32)  # NCHW image
    params = make_params(kp, cfg)

    out = laia_crnn_forward(x, params, cfg)
    out = jax.block_until_ready(out)
    # Expected output: (T=W_out=8, N=2, num_output_labels=12), seq-first.
    assert out.shape == (8, 2, 12), out.shape
    assert bool(jnp.all(jnp.isfinite(out)))
    print("KERNEL_OK")
</pallas_src>

<mosaic_0001>
module attributes {stable_mosaic.version = 11 : i64} {
  func.func @_conv_pool_kernel(%arg0: i32, %arg1: i32, %arg2: memref<8x16xbf16, #tpu.memory_space<vmem>>, %arg3: memref<1x16x256xbf16, #tpu.memory_space<vmem>>, %arg4: memref<8x1xf32, #tpu.memory_space<vmem>>, %arg5: memref<8x256xbf16, #tpu.memory_space<vmem>>, %arg6: memref<8x256xf32, #tpu.memory_space<vmem>>) attributes {dimension_semantics = [#tpu.dimension_semantics<parallel>, #tpu.dimension_semantics<arbitrary>], iteration_bounds = array<i64: 1, 4>, scalar_prefetch = 0 : i64, scratch_operands = 1 : i64, tpu.core_type = #tpu.core_type<tc>, window_params = [{pipeline_mode = #tpu.pipeline_mode<synchronous>, transform_indices = @transform_0, window_bounds = array<i64: 8, 16>}, {transform_indices = @transform_1, window_bounds = array<i64: 1, 16, 256>}, {pipeline_mode = #tpu.pipeline_mode<synchronous>, transform_indices = @transform_2, window_bounds = array<i64: 8, 1>}, {transform_indices = @transform_3, window_bounds = array<i64: 8, 256>}]} {
    %c0 = arith.constant 0 : index
    %c0_0 = arith.constant 0 : index
    %0 = vector.load %arg2[%c0, %c0_0] : memref<8x16xbf16, #tpu.memory_space<vmem>>, vector<8x16xbf16>
    %c0_1 = arith.constant 0 : index
    %c0_2 = arith.constant 0 : index
    %c0_3 = arith.constant 0 : index
    %1 = vector.load %arg3[%c0_1, %c0_2, %c0_3] : memref<1x16x256xbf16, #tpu.memory_space<vmem>>, vector<1x16x256xbf16>
    %2 = vector.shape_cast %1 : vector<1x16x256xbf16> to vector<16x256xbf16>
    %cst = arith.constant dense<0.000000e+00> : vector<8x256xf32>
    %3 = tpu.matmul %0, %2, %cst {dimension_numbers = #tpu.dot_dimension_numbers<[1], [0], [0], [1], [0, 0, 1, 1], [], []>} : vector<8x16xbf16>, vector<16x256xbf16>, vector<8x256xf32> -> vector<8x256xf32>
    %c0_i32 = arith.constant 0 : i32
    %4 = arith.cmpi eq, %arg1, %c0_i32 : i32
    %5 = arith.extui %4 : i1 to i32
    %c0_i32_4 = arith.constant 0 : i32
    %6 = arith.cmpi ne, %5, %c0_i32_4 : i32
    scf.if %6 {
      %c0_8 = arith.constant 0 : index
      %c0_9 = arith.constant 0 : index
      %13 = vector.load %arg6[%c0_8, %c0_9] : memref<8x256xf32, #tpu.memory_space<vmem>>, vector<8x256xf32>
      tpu.vector_store %arg6[%c0_8, %c0_9], %3 {strides = array<i32>} : memref<8x256xf32, #tpu.memory_space<vmem>>, vector<8x256xf32>,
    } else {
    }
    %c0_i32_5 = arith.constant 0 : i32
    %7 = arith.cmpi sgt, %arg1, %c0_i32_5 : i32
    %8 = arith.extui %7 : i1 to i32
    %c0_i32_6 = arith.constant 0 : i32
    %9 = arith.cmpi ne, %8, %c0_i32_6 : i32
    scf.if %9 {
      %c0_8 = arith.constant 0 : index
      %c0_9 = arith.constant 0 : index
      %13 = vector.load %arg6[%c0_8, %c0_9] : memref<8x256xf32, #tpu.memory_space<vmem>>, vector<8x256xf32>
      %14 = arith.maximumf %13, %3 : vector<8x256xf32>
      %c0_10 = arith.constant 0 : index
      %c0_11 = arith.constant 0 : index
      %15 = vector.load %arg6[%c0_10, %c0_11] : memref<8x256xf32, #tpu.memory_space<vmem>>, vector<8x256xf32>
      tpu.vector_store %arg6[%c0_10, %c0_11], %14 {strides = array<i32>} : memref<8x256xf32, #tpu.memory_space<vmem>>, vector<8x256xf32>,
    } else {
    }
    %c3_i32 = arith.constant 3 : i32
    %10 = arith.cmpi eq, %arg1, %c3_i32 : i32
    %11 = arith.extui %10 : i1 to i32
    %c0_i32_7 = arith.constant 0 : i32
    %12 = arith.cmpi ne, %11, %c0_i32_7 : i32
    scf.if %12 {
      %c0_8 = arith.constant 0 : index
      %c0_9 = arith.constant 0 : index
      %13 = vector.load %arg6[%c0_8, %c0_9] : memref<8x256xf32, #tpu.memory_space<vmem>>, vector<8x256xf32>
      %c0_10 = arith.constant 0 : index
      %c0_11 = arith.constant 0 : index
      %14 = vector.load %arg4[%c0_10, %c0_11] : memref<8x1xf32, #tpu.memory_space<vmem>>, vector<8x1xf32>
      %15 = vector.broadcast %14 : vector<8x1xf32> to vector<8x256xf32>
      %16 = arith.addf %13, %15 : vector<8x256xf32>
      %cst_12 = arith.constant 0.000000e+00 : f32
      %17 = vector.broadcast %cst_12 : f32 to vector<8x256xf32>
      %18 = arith.cmpf oge, %16, %17 : vector<8x256xf32>
      %cst_13 = arith.constant 0.00999999977 : f32
      %19 = vector.broadcast %cst_13 : f32 to vector<8x256xf32>
      %20 = arith.mulf %19, %16 : vector<8x256xf32>
      %21 = arith.select %18, %16, %20 : vector<8x256xi1>, vector<8x256xf32>
      %22 = arith.truncf %21 : vector<8x256xf32> to vector<8x256xbf16>
      %c0_14 = arith.constant 0 : index
      %c0_15 = arith.constant 0 : index
      %23 = vector.load %arg5[%c0_14, %c0_15] : memref<8x256xbf16, #tpu.memory_space<vmem>>, vector<8x256xbf16>
      tpu.vector_store %arg5[%c0_14, %c0_15], %22 {strides = array<i32>} : memref<8x256xbf16, #tpu.memory_space<vmem>>, vector<8x256xbf16>,
    } else {
    }
    return
  }
  func.func @transform_0(%arg0: i32, %arg1: i32) -> (i32, i32) {
    %c0_i32 = arith.constant 0 : i32
    %c0_i32_0 = arith.constant 0 : i32
    %c0_i32_1 = arith.constant 0 : i32
    return %c0_i32, %c0_i32_0 : i32, i32
  }
  func.func @transform_1(%arg0: i32, %arg1: i32) -> (i32, i32, i32) {
    %c0_i32 = arith.constant 0 : i32
    %c0_i32_0 = arith.constant 0 : i32
    return %arg1, %c0_i32, %arg0 : i32, i32, i32
  }
  func.func @transform_2(%arg0: i32, %arg1: i32) -> (i32, i32) {
    %c0_i32 = arith.constant 0 : i32
    %c0_i32_0 = arith.constant 0 : i32
    %c0_i32_1 = arith.constant 0 : i32
    return %c0_i32, %c0_i32_0 : i32, i32
  }
  func.func @transform_3(%arg0: i32, %arg1: i32) -> (i32, i32) {
    %c0_i32 = arith.constant 0 : i32
    %c0_i32_0 = arith.constant 0 : i32
    return %c0_i32, %arg0 : i32, i32
  }
}

</mosaic_0001>

<llo_original>
// kernel: tpu_custom_call.1
$region0: #{tpu_custom_call.1}
  #allocation0 [shape = 'u32[]', space=smem, size = 0x4, offset = 0x4, fixed_abs, tag = 'smem constant byte address 0x4 - core index']
  #allocation1 [shape = 'u32[144,128]{1,0:T(1,128)}', space=vmem, size = 0x12000, scoped, tag = 'internal scratch']
  #allocation2 [shape = 'f32[8,256]{1,0:T(8,128)}', space=vmem, size = 0x2000, scoped, tag = 'scratch operand']
  %s0 = inlined_call_operand.vmem [shape: bf16[8,16], index: 0, kind: input, shape index: {}]
  %s1 = inlined_call_operand.hbm [shape: bf16[4,16,256], index: 1, kind: input, shape index: {}]
  %s2 = inlined_call_operand.vmem [shape: f32[8,1], index: 2, kind: input, shape index: {}]
  %s3 = inlined_call_operand.hbm [shape: bf16[8,256], index: 3, kind: output, shape index: {}]
  %s4 = sld [smem:[#allocation0]]
  $region61: #{tpu_custom_call.1} parent=0
    _
  %s6 = ssub.s32 1, %s4
  %s7 = scalar_select 0, %s6, %s4
  $region1: #{tpu_custom_call.1} parent=0
    #allocation3 [shape = 'u8[16384]{0}', space=vmem, size = 0x4000, scoped, tag = 'input window, operand 1']
    #allocation4 [shape = 's32[2]{0}', space=sflag, size = 0x8, scoped, tag = 'scoped memory for tpu_custom_call.1']
    #allocation5 [shape = 's32[2]{0}', space=sflag, size = 0x8, scoped, tag = 'scoped memory for tpu_custom_call.1']
    #allocation6 [shape = 'u8[4096]{0}', space=vmem, size = 0x1000, scoped, tag = 'output window, operand 0, single buffered']
    %8 = vsyncpa [#allocation4], 0
    %s9 = scalar_lea.sflag [#allocation4], 1
    %10 = vsyncpa %s9, 0
    %11 = vsyncpa [#allocation5], 0
    loop: start=0, step=1, limit=6
    $region2: #{tpu_custom_call.1} parent=1 // loop_pre_header
      _
    $region3: #{tpu_custom_call.1} parent=1 // loop_header
      %s13 = sphi 0, %s17
      %p14 = scmp.ge.s32.totalorder %s13, 6
      %s20 = sphi 0, %s32
      %s21 = sphi 0, %s28
      %s22 = sphi 0, %s20
      %s23 = sphi 0, %s21
      %s24 = sphi 0, %s22
      %s25 = sphi 0, %s23
      %s33 = sphi 0, %s33
      %s35 = sphi 0, %s33
      %s36 = sphi 0, %s35
      %s50 = sphi 0, %s36
      %s58 = sphi 0, %s60
      %s61 = sphi 0, %s58
      %s62 = sphi 0, %s61
      %s78 = sphi 0, %s62
      %s82 = sphi 0, %s82
      %s84 = sphi 0, %s82
      %s85 = sphi 0, %s84
      %s99 = sphi 0, %s85
      %s105 = sphi 0, %s107
      %s108 = sphi 0, %s105
      %s109 = sphi 0, %s108
      %s125 = sphi 0, %s109
    $region4: #{tpu_custom_call.1} parent=1 // loop_header_branch
      %16 = sbr.rel (%p14) target = $region8
    $region5: #{tpu_custom_call.1} parent=1 // loop_body
      %s18 = ssub.s32 %s13, 1
      %s19 = ssub.s32 %s13, 2
      %s26 = sadd.s32 1, %s21
      %p27 = scmp.ge.s32.totalorder %s26, 4
      %s28 = scalar_select %p27, 0, %s26
      %s29 = sadd.s32 1, %s20
      %s30 = scalar_select %p27, %s29, %s20
      %p31 = scmp.ge.s32.totalorder %s30, 1
      %s32 = scalar_select %p31, 0, %s30
      %s34 = sadd.s32 %s33, 1
      %p37 = scmp.eq.s32.totalorder %s13, 3
      %p38 = scmp.ne.s32.totalorder %s33, %s35
      %p39 = scmp.eq.s32.totalorder %s13, 0
      %p40 = por %p38, %p39
      %p41 = scmp.ne.s32.totalorder %s33, %s35
      %p42 = scmp.eq.s32.totalorder %s18, 3
      %p43 = por %p41, %p42
      %p44 = scmp.ne.s32.totalorder %s35, %s36
      %p45 = scmp.eq.s32.totalorder %s18, 0
      %p46 = por %p44, %p45
      %p47 = scmp.ne.s32.totalorder %s35, %s36
      %p48 = scmp.eq.s32.totalorder %s19, 3
      %p49 = por %p47, %p48
      %p51 = scmp.ne.s32.totalorder %s36, %s50
      %p52 = scmp.eq.s32.totalorder %s19, 0
      %p53 = por %p51, %p52
      %s54 = ssub.s32 %s21, %s28
      %s55 = ssub.s32 %s20, %s32
      %s56 = sor.u32 %s54, %s55
      %p57 = scmp.eq.s32.totalorder %s56, 0
      %s59 = sadd.s32 %s58, 1
      %s60 = scalar_select %p57, %s58, %s59
      %p63 = pneg %p57
      %p64 = scmp.eq.s32.totalorder %s13, 3
      %p65 = por %p63, %p64
      %p66 = scmp.ne.s32.totalorder %s58, %s61
      %p67 = scmp.eq.s32.totalorder %s13, 0
      %p68 = por %p66, %p67
      %p69 = scmp.ne.s32.totalorder %s58, %s61
      %p70 = scmp.eq.s32.totalorder %s18, 3
      %p71 = por %p69, %p70
      %p72 = scmp.ne.s32.totalorder %s61, %s62
      %p73 = scmp.eq.s32.totalorder %s18, 0
      %p74 = por %p72, %p73
      %p75 = scmp.ne.s32.totalorder %s61, %s62
      %p76 = scmp.eq.s32.totalorder %s19, 3
      %p77 = por %p75, %p76
      %p79 = scmp.ne.s32.totalorder %s62, %s78
      %p80 = scmp.eq.s32.totalorder %s19, 0
      %p81 = por %p79, %p80
      %s83 = sadd.s32 %s82, 1
      %p86 = scmp.eq.s32.totalorder %s13, 3
      %p87 = scmp.ne.s32.totalorder %s82, %s84
      %p88 = scmp.eq.s32.totalorder %s13, 0
      %p89 = por %p87, %p88
      %p90 = scmp.ne.s32.totalorder %s82, %s84
      %p91 = scmp.eq.s32.totalorder %s18, 3
      %p92 = por %p90, %p91
      %p93 = scmp.ne.s32.totalorder %s84, %s85
      %p94 = scmp.eq.s32.totalorder %s18, 0
      %p95 = por %p93, %p94
      %p96 = scmp.ne.s32.totalorder %s84, %s85
      %p97 = scmp.eq.s32.totalorder %s19, 3
      %p98 = por %p96, %p97
      %p100 = scmp.ne.s32.totalorder %s85, %s99
      %p101 = scmp.eq.s32.totalorder %s19, 0
      %p102 = por %p100, %p101
      %s103 = ssub.s32 %s20, %s32
      %p104 = scmp.eq.s32.totalorder %s103, 0
      %s106 = sadd.s32 %s105, 1
      %s107 = scalar_select %p104, %s105, %s106
      %p110 = pneg %p104
      %p111 = scmp.eq.s32.totalorder %s13, 3
      %p112 = por %p110, %p111
      %p113 = scmp.ne.s32.totalorder %s105, %s108
      %p114 = scmp.eq.s32.totalorder %s13, 0
      %p115 = por %p113, %p114
      %p116 = scmp.ne.s32.totalorder %s105, %s108
      %p117 = scmp.eq.s32.totalorder %s18, 3
      %p118 = por %p116, %p117
      %p119 = scmp.ne.s32.totalorder %s108, %s109
      %p120 = scmp.eq.s32.totalorder %s18, 0
      %p121 = por %p119, %p120
      %p122 = scmp.ne.s32.totalorder %s108, %s109
      %p123 = scmp.eq.s32.totalorder %s19, 3
      %p124 = por %p122, %p123
      %p126 = scmp.ne.s32.totalorder %s109, %s125
      %p127 = scmp.eq.s32.totalorder %s19, 0
      %p128 = por %p126, %p127
      %p129 = scmp.le.s32.totalorder 1, %s13
      %p130 = scmp.lt.s32.totalorder %s13, 5
      %p131 = pnand %p129, %p130
      %p132 = pneg %p131
      // Predicated region
      $region9: #{tpu_custom_call.1} parent=5 // pred_check
        _
      $region10: #{tpu_custom_call.1} parent=5 // pred_check_branch
        %134 = sbr.rel (%p131) target = $region12
      $region11: #{tpu_custom_call.1} parent=5 // pred_region
        %s135 = ssub.s32 %s13, 1
        // Predicated region
        $region13: #{tpu_custom_call.1} parent=11 // pred_check
          %p136 = pneg %p46
        $region14: #{tpu_custom_call.1} parent=11 // pred_check_branch
          %138 = sbr.rel (%p136) target = $region16
        $region15: #{tpu_custom_call.1} parent=11 // pred_region
          _
        $region16: #{tpu_custom_call.1} parent=11 // pred_fallthru
          _
        // Predicated region
        $region17: #{tpu_custom_call.1} parent=11 // pred_check
          %p139 = pneg %p95
        $region18: #{tpu_custom_call.1} parent=11 // pred_check_branch
          %141 = sbr.rel (%p139) target = $region20
        $region19: #{tpu_custom_call.1} parent=11 // pred_region
          _
        $region20: #{tpu_custom_call.1} parent=11 // pred_fallthru
          _
      $region12: #{tpu_custom_call.1} parent=5 // pred_fallthru
        _
      %p142 = scmp.lt.s32.totalorder %s13, 4
      // Predicated region
      $region21: #{tpu_custom_call.1} parent=5 // pred_check
        %p143 = pneg %p142
      $region22: #{tpu_custom_call.1} parent=5 // pred_check_branch
        %145 = sbr.rel (%p143) target = $region24
      $region23: #{tpu_custom_call.1} parent=5 // pred_region
        // Predicated region
        $region25: #{tpu_custom_call.1} parent=23 // pred_check
          %p146 = pneg %p68
        $region26: #{tpu_custom_call.1} parent=23 // pred_check_branch
          %148 = sbr.rel (%p146) target = $region28
        $region27: #{tpu_custom_call.1} parent=23 // pred_region
          %s149 = sand.u32 %s58, 1
          %s150 = scalar_lea.sflag [#allocation4], %s149
          %s151 = sand.u32 %s58, 1
          %s152 = smul.addr %s151, 16
          %s153 = scalar_lea.vmem [#allocation3], %s152
          %s154 = smul.u32 2, %s20
          %s156 = ssub.s32 256, 256
          %157 = vsyncadd %s150, %s156
          %s158 = smul.addr %s21, 4
          %s159 = sadd.s32 %s154, %s158
          %s160 = smul.addr %s159, 64
          %s161 = scalar_lea.hbm %s1, %s160
          %s162 = sshll.u32 %s153, 4
          %s163 = int_to_ptr.vmem [resolvable:$true] %s162
          %168 = dma.hbm_to_vmem [thread:$0]  %s161, 256, %s163, %s150, 128, 128, 8
        $region28: #{tpu_custom_call.1} parent=23 // pred_fallthru
          _
      $region24: #{tpu_custom_call.1} parent=5 // pred_fallthru
        _
      %p169 = scmp.le.s32.totalorder 1, %s13
      %p170 = scmp.lt.s32.totalorder %s13, 5
      %p171 = pnand %p169, %p170
      %p172 = pneg %p171
      // Predicated region
      $region29: #{tpu_custom_call.1} parent=5 // pred_check
        _
      $region30: #{tpu_custom_call.1} parent=5 // pred_check_branch
        %174 = sbr.rel (%p171) target = $region32
      $region31: #{tpu_custom_call.1} parent=5 // pred_region
        %s175 = ssub.s32 %s13, 1
        %s176 = sand.u32 %s61, 1
        %s177 = scalar_lea.sflag [#allocation4], %s176
        %s178 = sand.u32 %s61, 1
        %s179 = smul.addr %s178, 16
        %s180 = scalar_lea.vmem [#allocation3], %s179
        // Predicated region
        $region33: #{tpu_custom_call.1} parent=31 // pred_check
          %p181 = pneg %p74
        $region34: #{tpu_custom_call.1} parent=31 // pred_check_branch
          %183 = sbr.rel (%p181) target = $region36
        $region35: #{tpu_custom_call.1} parent=31 // pred_region
          %184 = dma.done %s177, 256
        $region36: #{tpu_custom_call.1} parent=31 // pred_fallthru
          _
        %p185 = pneg %p46
        %p186 = pneg %p43
        %s187 = sand.u32 %s61, 1
        %s188 = scalar_lea.sflag [#allocation4], %s187
        %s189 = sand.u32 %s61, 1
        %s190 = smul.addr %s189, 16
        %s191 = scalar_lea.vmem [#allocation3], %s190
        %p192 = pneg %p74
        %p193 = pneg %p71
        %p194 = pneg %p95
        %p195 = pneg %p92
        %p196 = pneg %p121
        %p197 = pneg %p118
        %s198 = smul.u32 2, %s22
        %s199 = smul.u32 2, %s22
        %v201 = vld [vmem:[%s0] sm:$0xf]
        %v202 = vld [vmem:[%s180] sm:$0xff]
        %v203 = vld [vmem:[%s180 + $0x8] sm:$0xff]
        %v206 = vunpack.c.l.b16 %v202
        %v207 = vunpack.c.h.b16 %v202
        %v208 = vunpack.c.l.b16 %v203
        %v209 = vunpack.c.h.b16 %v203
        %v210 = vpack.c.b16 %v208, %v206
        %v211 = vpack.c.b16 %v209, %v207
        %vm214 = vcmask 130048
        %v216 = vsel %vm214, %v201, 0
        %218 = vmatprep.subr.bf16.mxu0 %v211
        %219 = vmatpush1.bf16.msra.mxu0 %v210
        %220 = vmatprep.subr.bf16.mxu0 0
        %221 = vmatpush1.bf16.msra.mxu0 0
        %222 = vmatprep.subr.bf16.mxu0 0
        %223 = vmatpush1.bf16.msra.mxu0 0
        %224 = vmatprep.subr.bf16.mxu0 0
        %225 = vmatpush1.bf16.msra.mxu0 0
        %226 = vmatprep.subr.bf16.mxu0 0
        %227 = vmatpush1.bf16.msra.mxu0 0
        %228 = vmatprep.subr.bf16.mxu0 0
        %229 = vmatpush1.bf16.msra.mxu0 0
        %230 = vmatprep.subr.bf16.mxu0 0
        %231 = vmatpush1.bf16.msra.mxu0 0
        %232 = vmatprep.subr.bf16.mxu0 0
        %233 = vmatpush1.bf16.msra.mxu0 0
        %234 = vmatprep.subr.bf16.mxu0 0
        %235 = vmatpush1.bf16.msra.mxu0 0
        %236 = vmatprep.subr.bf16.mxu0 0
        %237 = vmatpush1.bf16.msra.mxu0 0
        %238 = vmatprep.subr.bf16.mxu0 0
        %239 = vmatpush1.bf16.msra.mxu0 0
        %240 = vmatprep.subr.bf16.mxu0 0
        %241 = vmatpush1.bf16.msra.mxu0 0
        %242 = vmatprep.subr.bf16.mxu0 0
        %243 = vmatpush1.bf16.msra.mxu0 0
        %244 = vmatprep.subr.bf16.mxu0 0
        %245 = vmatpush1.bf16.msra.mxu0 0
        %246 = vmatprep.subr.bf16.mxu0 0
        %247 = vmatpush1.bf16.msra.mxu0 0
        %248 = vmatprep.subr.bf16.mxu0 0
        %249 = vmatpush1.bf16.msra.mxu0 0
        %250 = vmatprep.mubr.bf16.mxu0 0
        %251 = vmatmul.mubr.bf16.gmra.mrb[0].mxu0 %v216
        %v252 = vpop.f32.mrb[0].mxu0
        %v253 = vadd.f32 0.0, %v252
        %v254 = vpop.f32.mrb[0].mxu0
        %v255 = vadd.f32 0.0, %v254
        %v256 = vpop.f32.mrb[0].mxu0
        %v257 = vpop.f32.mrb[0].mxu0
        %258 = vdwg.mxu0
        %p259 = scmp.eq.s32.totalorder %s23, 0
        // Predicated region
        $region37: #{tpu_custom_call.1} parent=31 // pred_check
          %p260 = pneg %p259
        $region38: #{tpu_custom_call.1} parent=31 // pred_check_branch
          %262 = sbr.rel (%p260) target = $region40
        $region39: #{tpu_custom_call.1} parent=31 // pred_region
          %263 = vst [vmem:[#allocation2] sm:$0xff] %v253
          %264 = vst [vmem:[#allocation2 + $0x8] sm:$0xff] %v255
        $region40: #{tpu_custom_call.1} parent=31 // pred_fallthru
          _
        %p265 = scmp.gt.s32.totalorder %s23, 0
        // Predicated region
        $region41: #{tpu_custom_call.1} parent=31 // pred_check
          %p266 = pneg %p265
        $region42: #{tpu_custom_call.1} parent=31 // pred_check_branch
          %268 = sbr.rel (%p266) target = $region44
        $region43: #{tpu_custom_call.1} parent=31 // pred_region
          %v269 = vld [vmem:[#allocation2] sm:$0xff]
          %v270 = vld [vmem:[#allocation2 + $0x8] sm:$0xff]
          %v271 = vmax.f32 %v269, %v253
          %v272 = vmax.f32 %v270, %v255
          %273 = vst [vmem:[#allocation2] sm:$0xff] %v271
          %274 = vst [vmem:[#allocation2 + $0x8] sm:$0xff] %v272
        $region44: #{tpu_custom_call.1} parent=31 // pred_fallthru
          _
        %p275 = scmp.eq.s32.totalorder %s23, 3
        // Predicated region
        $region45: #{tpu_custom_call.1} parent=31 // pred_check
          %p276 = pneg %p275
        $region46: #{tpu_custom_call.1} parent=31 // pred_check_branch
          %278 = sbr.rel (%p276) target = $region48
        $region47: #{tpu_custom_call.1} parent=31 // pred_region
          %v279 = vld [vmem:[#allocation2] sm:$0xff]
          %v280 = vld [vmem:[#allocation2 + $0x8] sm:$0xff]
          %v281 = vld [vmem:[%s2] sm:$0xff]
          %283 = vset.pattern.permute.xlu0 0
          %284 = vperm.xlu0 %283, %v281
          %v285 = vpop.permute.xlu0 %284
          %v287 = vadd.f32 %v279, %v285
          %v288 = vadd.f32 %v280, %v285
          %vm289 = vcmp.ge.f32.partialorder %v287, 0.0
          %vm290 = vcmp.ge.f32.partialorder %v288, 0.0
          %v291 = vmul.f32 %v287, 0.01
          %v292 = vmul.f32 %v288, 0.01
          %v293 = vsel %vm289, %v287, %v291
          %v294 = vsel %vm290, %v288, %v292
          %v295 = vpack.c.bf16 %v293, %v293
          %v296 = vpack.c.bf16 %v294, %v294
          %v299 = vunpack.c.l.b16 %v295
          %v300 = vunpack.c.l.b16 %v296
          %v301 = vpack.c.b16 %v300, %v299
          %303 = vst [vmem:[#allocation6] sm:$0xff] %v301
        $region48: #{tpu_custom_call.1} parent=31 // pred_fallthru
          _
        // Predicated region
        $region49: #{tpu_custom_call.1} parent=31 // pred_check
          %p304 = pneg %p118
        $region50: #{tpu_custom_call.1} parent=31 // pred_check_branch
          %306 = sbr.rel (%p304) target = $region52
        $region51: #{tpu_custom_call.1} parent=31 // pred_region
          %s307 = smul.u32 2, %s22
          %s309 = ssub.s32 128, 128
          %310 = vsyncadd [#allocation5], %s309
          %s311 = smul.addr %s307, 64
          %s312 = scalar_lea.hbm %s3, %s311
          %s314 = sshll.u32 [#allocation6], 4
          %s315 = int_to_ptr.vmem [resolvable:$true] %s314
          %317 = dma.vmem_to_hbm [thread:$0]  %s315, 128, %s312, [#allocation5]
        $region52: #{tpu_custom_call.1} parent=31 // pred_fallthru
          _
        // Predicated region
        $region53: #{tpu_custom_call.1} parent=31 // pred_check
          %p318 = pneg %p118
        $region54: #{tpu_custom_call.1} parent=31 // pred_check_branch
          %320 = sbr.rel (%p318) target = $region56
        $region55: #{tpu_custom_call.1} parent=31 // pred_region
          %321 = dma.done [#allocation5], 128
        $region56: #{tpu_custom_call.1} parent=31 // pred_fallthru
          _
      $region32: #{tpu_custom_call.1} parent=5 // pred_fallthru
        _
      %p322 = scmp.le.s32.totalorder 2, %s13
      // Predicated region
      $region57: #{tpu_custom_call.1} parent=5 // pred_check
        %p323 = pneg %p322
      $region58: #{tpu_custom_call.1} parent=5 // pred_check_branch
        %325 = sbr.rel (%p323) target = $region60
      $region59: #{tpu_custom_call.1} parent=5 // pred_region
        %s326 = ssub.s32 %s13, 2
      $region60: #{tpu_custom_call.1} parent=5 // pred_fallthru
        _
    $region6: #{tpu_custom_call.1} parent=1 // loop_footer
      %s17 = sadd.s32 1, %s13
    $region7: #{tpu_custom_call.1} parent=1 // loop_footer_branch
      %12 = sbr.rel target = $region3
    $region8: #{tpu_custom_call.1} parent=1 // loop_exit
      _
    %327 = vsyncpa [#allocation4], 1
    %s328 = scalar_lea.sflag [#allocation4], 1
    %329 = vsyncpa %s328, 1
    %330 = vsyncpa [#allocation5], 1
    %s331 = scalar_lea.sflag [#allocation5], 1
    %332 = vsyncpa %s331, 1

</llo_original>
